<compile_context>
chip_gen: v7x
topology: tpu7x:2x2x1
jax: 0.10.0
libtpu: 0.0.40
codegen_flags: <defaults>
</compile_context>

<pallas_src>
import functools

import numpy as np
import jax
import jax.numpy as jnp
from jax import lax
from jax.experimental import pallas as pl
from jax.experimental.pallas import tpu as pltpu

K = 3  # 3x3 kernel, stride=1, padding=1 -> "same" spatial size


def _round_up(x, m):
    return (x + m - 1) // m * m


def _convt_silu_kernel(x_ref, w_ref, b_ref, m_ref, o_ref, *, W, OFF):
    """Fused ConvTranspose2d(3x3, s=1, p=1) + SiLU over a batch-folded slab.

    x_ref: (Cin, Lx)       all N flattened images laid out at a fixed column
                           STRIDE, zeros elsewhere; valid data starts at OFF.
    w_ref: (9, Cout, Cin)  per-tap weights (flipped for the transposed-conv ->
                           regular-conv identity).
    b_ref: (Cout, 1)       bias.
    m_ref: (2, L_out)      row-wrap masks over output columns:
                           [0] = (w != 0), [1] = (w != W-1).
    o_ref: (Cout, L_out)   lane-dense output slab (per-batch windows sliced in
                           the wrapper).
    """
    Cout, L_out = o_ref.shape

    xfull = x_ref[...]                  # (Cin, Lx), a handful of vregs
    masks = m_ref[...]                  # (2, L_out)
    not_first_col = masks[0:1, :]       # kills the w-1 read at w == 0
    not_last_col = masks[1:2, :]        # kills the w+1 read at w == W-1

    # f32 accumulator with the bias folded into the init (hoisted, single op).
    acc = jnp.broadcast_to(b_ref[...], (Cout, L_out)).astype(jnp.float32)

    # 9 shifted MXU dots, fully unrolled at trace time.  Each tap is a static
    # lane slice of the resident slab; row (dh) shifts land in zero padding,
    # column (dw) shifts are fixed up by masking the (Cout, L_out) tap result.
    for kh in range(K):
        for kw in range(K):
            dh, dw = kh - 1, kw - 1
            start = OFF + dh * W + dw                 # static python int >= 0
            xs = xfull[:, start:start + L_out]        # (Cin, L_out) lane slice
            t = jnp.dot(w_ref[kh * K + kw], xs,
                        preferred_element_type=jnp.float32)
            if dw == -1:
                t = t * not_first_col
            elif dw == 1:
                t = t * not_last_col
            acc = acc + t

    # SiLU in f32 (sigmoid goes to the EUP; essentially free at this size).
    o_ref[...] = (acc * jax.nn.sigmoid(acc)).astype(o_ref.dtype)


def prepare_params(w_t, bias):
    """One-time weight prep (hoisted out of the jitted forward path).

    w_t: (Cin, Cout, 3, 3) in PyTorch ConvTranspose2d layout; bias: (Cout,).
    Transposed conv (stride=1, pad=1) == regular conv with the spatially
    flipped kernel and in/out channels swapped.
    """
    w_conv = jnp.transpose(jnp.flip(w_t, axis=(2, 3)), (1, 0, 2, 3))  # (Cout,Cin,K,K)
    w_taps = jnp.transpose(w_conv, (2, 3, 0, 1)).reshape(K * K, *w_conv.shape[:2])
    return w_taps, bias.reshape(-1, 1)


@jax.jit
def conv_transpose_silu(x_nchw, w_taps, b_col):
    """x_nchw: (N, Cin, H, W); w_taps: (9, Cout, Cin); b_col: (Cout, 1).
    Returns SiLU(ConvTranspose2d(x)) with shape (N, Cout, H, W)."""
    N, Cin, H, W = x_nchw.shape
    _, Cout, _ = w_taps.shape
    HW = H * W
    OFF = W + 1                                    # max |tap shift| (dh*W + dw)
    STRIDE = _round_up(HW + W + 1, 8)              # per-batch column stride
    L_out = max(_round_up(N * STRIDE, 128), 128)   # lane-dense output width
    Lx = L_out + 2 * OFF                           # input slab width

    # Lay all N flattened images into one (Cin, Lx) slab at column stride
    # STRIDE (zeros elsewhere) -- a couple of tiny XLA pads + one transpose.
    x_flat = x_nchw.reshape(N, Cin, HW)
    x_strided = jnp.pad(x_flat, ((0, 0), (0, 0), (0, STRIDE - HW)))
    x_slab = jnp.transpose(x_strided, (1, 0, 2)).reshape(Cin, N * STRIDE)
    x_slab = jnp.pad(x_slab, ((0, 0), (OFF, Lx - OFF - N * STRIDE)))

    # Precomputed row-wrap masks over output-slab columns (trace-time consts).
    col = (np.arange(L_out) % STRIDE) % W
    masks = jnp.asarray(
        np.stack([(col != 0), (col != W - 1)]).astype(np.float32))   # (2, L_out)

    kernel = functools.partial(_convt_silu_kernel, W=W, OFF=OFF)

    cost = pl.CostEstimate(
        flops=2 * K * K * Cout * Cin * L_out,
        transcendentals=Cout * L_out,
        bytes_accessed=4 * (Cin * Lx + K * K * Cout * Cin + Cout
                            + 2 * L_out + Cout * L_out),
    )

    out_slab = pl.pallas_call(
        kernel,
        out_shape=jax.ShapeDtypeStruct((Cout, L_out), jnp.float32),
        grid=(1,),
        in_specs=[
            pl.BlockSpec((Cin, Lx), lambda i: (0, 0)),
            pl.BlockSpec((K * K, Cout, Cin), lambda i: (0, 0, 0)),
            pl.BlockSpec((Cout, 1), lambda i: (0, 0)),
            pl.BlockSpec((2, L_out), lambda i: (0, 0)),
        ],
        out_specs=pl.BlockSpec((Cout, L_out), lambda i: (0, 0)),
        compiler_params=pltpu.CompilerParams(
            dimension_semantics=("arbitrary",)),
        cost_estimate=cost,
    )(x_slab, w_taps, b_col, masks)

    # Slice each batch's valid HW window back out of the lane-dense slab.
    y = out_slab[:, :N * STRIDE].reshape(Cout, N, STRIDE)[:, :, :HW]
    return jnp.transpose(y, (1, 0, 2)).reshape(N, Cout, H, W)


def _reference(x_nchw, w_t, bias):
    # Pure-JAX reference: transposed conv as flipped regular conv, then SiLU.
    w_conv = jnp.transpose(jnp.flip(w_t, axis=(2, 3)), (1, 0, 2, 3))  # OIHW
    y = lax.conv_general_dilated(
        x_nchw, w_conv, window_strides=(1, 1), padding=((1, 1), (1, 1)),
        dimension_numbers=("NCHW", "OIHW", "NCHW"),
        precision=lax.Precision.HIGHEST)
    y = y + bias.reshape(1, -1, 1, 1)
    return y * jax.nn.sigmoid(y)


if __name__ == "__main__":
    key = jax.random.PRNGKey(0)
    k_x, k_w, k_b = jax.random.split(key, 3)

    N, Cin, Cout, H, W = 2, 60, 8, 5, 5
    x = jax.random.normal(k_x, (N, Cin, H, W), dtype=jnp.float32)

    # Deterministic init mimicking PyTorch's uniform(-sqrt(k), sqrt(k)).
    fan = Cin * K * K
    bound = 1.0 / float(np.sqrt(fan))
    w_t = jax.random.uniform(k_w, (Cin, Cout, K, K), jnp.float32, -bound, bound)
    bias = jax.random.uniform(k_b, (Cout,), jnp.float32, -bound, bound)

    # One-time parameter prep (hoisted out of the jitted forward path).
    w_taps, b_col = prepare_params(w_t, bias)

    out = jax.block_until_ready(conv_transpose_silu(x, w_taps, b_col))
    ref = jax.block_until_ready(_reference(x, w_t, bias))

    assert out.shape == (N, Cout, H, W)
    assert jnp.max(jnp.abs(out - ref)) < 2e-4

    print("KERNEL_OK")
</pallas_src>

<mosaic_0001>
module attributes {stable_mosaic.version = 11 : i64} {
  func.func @_convt_silu_kernel(%arg0: i32, %arg1: memref<60x140xf32, #tpu.memory_space<vmem>>, %arg2: memref<9x8x60xf32, #tpu.memory_space<vmem>>, %arg3: memref<8x1xf32, #tpu.memory_space<vmem>>, %arg4: memref<2x128xf32, #tpu.memory_space<vmem>>, %arg5: memref<8x128xf32, #tpu.memory_space<vmem>>) attributes {dimension_semantics = [#tpu.dimension_semantics<arbitrary>], iteration_bounds = array<i64: 1>, scalar_prefetch = 0 : i64, scratch_operands = 0 : i64, tpu.core_type = #tpu.core_type<tc>, window_params = [{pipeline_mode = #tpu.pipeline_mode<synchronous>, transform_indices = @transform_0, window_bounds = array<i64: 60, 140>}, {pipeline_mode = #tpu.pipeline_mode<synchronous>, transform_indices = @transform_1, window_bounds = array<i64: 9, 8, 60>}, {pipeline_mode = #tpu.pipeline_mode<synchronous>, transform_indices = @transform_2, window_bounds = array<i64: 8, 1>}, {pipeline_mode = #tpu.pipeline_mode<synchronous>, transform_indices = @transform_3, window_bounds = array<i64: 2, 128>}, {pipeline_mode = #tpu.pipeline_mode<synchronous>, transform_indices = @transform_4, window_bounds = array<i64: 8, 128>}]} {
    %c0 = arith.constant 0 : index
    %c0_0 = arith.constant 0 : index
    %0 = vector.load %arg1[%c0, %c0_0] : memref<60x140xf32, #tpu.memory_space<vmem>>, vector<60x140xf32>
    %c0_1 = arith.constant 0 : index
    %c0_2 = arith.constant 0 : index
    %1 = vector.load %arg4[%c0_1, %c0_2] : memref<2x128xf32, #tpu.memory_space<vmem>>, vector<2x128xf32>
    %2 = vector.extract_strided_slice %1 {offsets = [0, 0], sizes = [1, 128], strides = [1, 1]} : vector<2x128xf32> to vector<1x128xf32>
    %3 = vector.extract_strided_slice %1 {offsets = [1, 0], sizes = [1, 128], strides = [1, 1]} : vector<2x128xf32> to vector<1x128xf32>
    %c0_3 = arith.constant 0 : index
    %c0_4 = arith.constant 0 : index
    %4 = vector.load %arg3[%c0_3, %c0_4] : memref<8x1xf32, #tpu.memory_space<vmem>>, vector<8x1xf32>
    %5 = vector.shape_cast %4 : vector<8x1xf32> to vector<8x1xf32>
    %6 = vector.broadcast %5 : vector<8x1xf32> to vector<8x128xf32>
    %7 = vector.extract_strided_slice %0 {offsets = [0, 0], sizes = [60, 128], strides = [1, 1]} : vector<60x140xf32> to vector<60x128xf32>
    %c0_5 = arith.constant 0 : index
    %c0_6 = arith.constant 0 : index
    %c0_7 = arith.constant 0 : index
    %8 = vector.load %arg2[%c0_5, %c0_6, %c0_7] : memref<9x8x60xf32, #tpu.memory_space<vmem>>, vector<1x8x60xf32>
    %9 = vector.shape_cast %8 : vector<1x8x60xf32> to vector<8x60xf32>
    %cst = arith.constant dense<0.000000e+00> : vector<8x128xf32>
    %10 = tpu.matmul %9, %7, %cst {dimension_numbers = #tpu.dot_dimension_numbers<[1], [0], [0], [1], [0, 0, 1, 1], [], []>} : vector<8x60xf32>, vector<60x128xf32>, vector<8x128xf32> -> vector<8x128xf32>
    %11 = vector.broadcast %2 : vector<1x128xf32> to vector<8x128xf32>
    %12 = arith.mulf %10, %11 : vector<8x128xf32>
    %13 = arith.addf %6, %12 : vector<8x128xf32>
    %14 = vector.extract_strided_slice %0 {offsets = [0, 1], sizes = [60, 128], strides = [1, 1]} : vector<60x140xf32> to vector<60x128xf32>
    %c1 = arith.constant 1 : index
    %c0_8 = arith.constant 0 : index
    %c0_9 = arith.constant 0 : index
    %15 = vector.load %arg2[%c1, %c0_8, %c0_9] : memref<9x8x60xf32, #tpu.memory_space<vmem>>, vector<1x8x60xf32>
    %16 = vector.shape_cast %15 : vector<1x8x60xf32> to vector<8x60xf32>
    %cst_10 = arith.constant dense<0.000000e+00> : vector<8x128xf32>
    %17 = tpu.matmul %16, %14, %cst_10 {dimension_numbers = #tpu.dot_dimension_numbers<[1], [0], [0], [1], [0, 0, 1, 1], [], []>} : vector<8x60xf32>, vector<60x128xf32>, vector<8x128xf32> -> vector<8x128xf32>
    %18 = arith.addf %13, %17 : vector<8x128xf32>
    %19 = vector.extract_strided_slice %0 {offsets = [0, 2], sizes = [60, 128], strides = [1, 1]} : vector<60x140xf32> to vector<60x128xf32>
    %c2 = arith.constant 2 : index
    %c0_11 = arith.constant 0 : index
    %c0_12 = arith.constant 0 : index
    %20 = vector.load %arg2[%c2, %c0_11, %c0_12] : memref<9x8x60xf32, #tpu.memory_space<vmem>>, vector<1x8x60xf32>
    %21 = vector.shape_cast %20 : vector<1x8x60xf32> to vector<8x60xf32>
    %cst_13 = arith.constant dense<0.000000e+00> : vector<8x128xf32>
    %22 = tpu.matmul %21, %19, %cst_13 {dimension_numbers = #tpu.dot_dimension_numbers<[1], [0], [0], [1], [0, 0, 1, 1], [], []>} : vector<8x60xf32>, vector<60x128xf32>, vector<8x128xf32> -> vector<8x128xf32>
    %23 = vector.broadcast %3 : vector<1x128xf32> to vector<8x128xf32>
    %24 = arith.mulf %22, %23 : vector<8x128xf32>
    %25 = arith.addf %18, %24 : vector<8x128xf32>
    %26 = vector.extract_strided_slice %0 {offsets = [0, 5], sizes = [60, 128], strides = [1, 1]} : vector<60x140xf32> to vector<60x128xf32>
    %c3 = arith.constant 3 : index
    %c0_14 = arith.constant 0 : index
    %c0_15 = arith.constant 0 : index
    %27 = vector.load %arg2[%c3, %c0_14, %c0_15] : memref<9x8x60xf32, #tpu.memory_space<vmem>>, vector<1x8x60xf32>
    %28 = vector.shape_cast %27 : vector<1x8x60xf32> to vector<8x60xf32>
    %cst_16 = arith.constant dense<0.000000e+00> : vector<8x128xf32>
    %29 = tpu.matmul %28, %26, %cst_16 {dimension_numbers = #tpu.dot_dimension_numbers<[1], [0], [0], [1], [0, 0, 1, 1], [], []>} : vector<8x60xf32>, vector<60x128xf32>, vector<8x128xf32> -> vector<8x128xf32>
    %30 = vector.broadcast %2 : vector<1x128xf32> to vector<8x128xf32>
    %31 = arith.mulf %29, %30 : vector<8x128xf32>
    %32 = arith.addf %25, %31 : vector<8x128xf32>
    %33 = vector.extract_strided_slice %0 {offsets = [0, 6], sizes = [60, 128], strides = [1, 1]} : vector<60x140xf32> to vector<60x128xf32>
    %c4 = arith.constant 4 : index
    %c0_17 = arith.constant 0 : index
    %c0_18 = arith.constant 0 : index
    %34 = vector.load %arg2[%c4, %c0_17, %c0_18] : memref<9x8x60xf32, #tpu.memory_space<vmem>>, vector<1x8x60xf32>
    %35 = vector.shape_cast %34 : vector<1x8x60xf32> to vector<8x60xf32>
    %cst_19 = arith.constant dense<0.000000e+00> : vector<8x128xf32>
    %36 = tpu.matmul %35, %33, %cst_19 {dimension_numbers = #tpu.dot_dimension_numbers<[1], [0], [0], [1], [0, 0, 1, 1], [], []>} : vector<8x60xf32>, vector<60x128xf32>, vector<8x128xf32> -> vector<8x128xf32>
    %37 = arith.addf %32, %36 : vector<8x128xf32>
    %38 = vector.extract_strided_slice %0 {offsets = [0, 7], sizes = [60, 128], strides = [1, 1]} : vector<60x140xf32> to vector<60x128xf32>
    %c5 = arith.constant 5 : index
    %c0_20 = arith.constant 0 : index
    %c0_21 = arith.constant 0 : index
    %39 = vector.load %arg2[%c5, %c0_20, %c0_21] : memref<9x8x60xf32, #tpu.memory_space<vmem>>, vector<1x8x60xf32>
    %40 = vector.shape_cast %39 : vector<1x8x60xf32> to vector<8x60xf32>
    %cst_22 = arith.constant dense<0.000000e+00> : vector<8x128xf32>
    %41 = tpu.matmul %40, %38, %cst_22 {dimension_numbers = #tpu.dot_dimension_numbers<[1], [0], [0], [1], [0, 0, 1, 1], [], []>} : vector<8x60xf32>, vector<60x128xf32>, vector<8x128xf32> -> vector<8x128xf32>
    %42 = vector.broadcast %3 : vector<1x128xf32> to vector<8x128xf32>
    %43 = arith.mulf %41, %42 : vector<8x128xf32>
    %44 = arith.addf %37, %43 : vector<8x128xf32>
    %45 = vector.extract_strided_slice %0 {offsets = [0, 10], sizes = [60, 128], strides = [1, 1]} : vector<60x140xf32> to vector<60x128xf32>
    %c6 = arith.constant 6 : index
    %c0_23 = arith.constant 0 : index
    %c0_24 = arith.constant 0 : index
    %46 = vector.load %arg2[%c6, %c0_23, %c0_24] : memref<9x8x60xf32, #tpu.memory_space<vmem>>, vector<1x8x60xf32>
    %47 = vector.shape_cast %46 : vector<1x8x60xf32> to vector<8x60xf32>
    %cst_25 = arith.constant dense<0.000000e+00> : vector<8x128xf32>
    %48 = tpu.matmul %47, %45, %cst_25 {dimension_numbers = #tpu.dot_dimension_numbers<[1], [0], [0], [1], [0, 0, 1, 1], [], []>} : vector<8x60xf32>, vector<60x128xf32>, vector<8x128xf32> -> vector<8x128xf32>
    %49 = vector.broadcast %2 : vector<1x128xf32> to vector<8x128xf32>
    %50 = arith.mulf %48, %49 : vector<8x128xf32>
    %51 = arith.addf %44, %50 : vector<8x128xf32>
    %52 = vector.extract_strided_slice %0 {offsets = [0, 11], sizes = [60, 128], strides = [1, 1]} : vector<60x140xf32> to vector<60x128xf32>
    %c7 = arith.constant 7 : index
    %c0_26 = arith.constant 0 : index
    %c0_27 = arith.constant 0 : index
    %53 = vector.load %arg2[%c7, %c0_26, %c0_27] : memref<9x8x60xf32, #tpu.memory_space<vmem>>, vector<1x8x60xf32>
    %54 = vector.shape_cast %53 : vector<1x8x60xf32> to vector<8x60xf32>
    %cst_28 = arith.constant dense<0.000000e+00> : vector<8x128xf32>
    %55 = tpu.matmul %54, %52, %cst_28 {dimension_numbers = #tpu.dot_dimension_numbers<[1], [0], [0], [1], [0, 0, 1, 1], [], []>} : vector<8x60xf32>, vector<60x128xf32>, vector<8x128xf32> -> vector<8x128xf32>
    %56 = arith.addf %51, %55 : vector<8x128xf32>
    %57 = vector.extract_strided_slice %0 {offsets = [0, 12], sizes = [60, 128], strides = [1, 1]} : vector<60x140xf32> to vector<60x128xf32>
    %c8 = arith.constant 8 : index
    %c0_29 = arith.constant 0 : index
    %c0_30 = arith.constant 0 : index
    %58 = vector.load %arg2[%c8, %c0_29, %c0_30] : memref<9x8x60xf32, #tpu.memory_space<vmem>>, vector<1x8x60xf32>
    %59 = vector.shape_cast %58 : vector<1x8x60xf32> to vector<8x60xf32>
    %cst_31 = arith.constant dense<0.000000e+00> : vector<8x128xf32>
    %60 = tpu.matmul %59, %57, %cst_31 {dimension_numbers = #tpu.dot_dimension_numbers<[1], [0], [0], [1], [0, 0, 1, 1], [], []>} : vector<8x60xf32>, vector<60x128xf32>, vector<8x128xf32> -> vector<8x128xf32>
    %61 = vector.broadcast %3 : vector<1x128xf32> to vector<8x128xf32>
    %62 = arith.mulf %60, %61 : vector<8x128xf32>
    %63 = arith.addf %56, %62 : vector<8x128xf32>
    %64 = arith.negf %63 : vector<8x128xf32>
    %65 = math.exp %64 : vector<8x128xf32>
    %cst_32 = arith.constant 1.000000e+00 : f32
    %66 = vector.broadcast %cst_32 : f32 to vector<8x128xf32>
    %67 = arith.addf %66, %65 : vector<8x128xf32>
    %68 = arith.divf %66, %67 : vector<8x128xf32>
    %69 = arith.mulf %63, %68 : vector<8x128xf32>
    %c0_33 = arith.constant 0 : index
    %c0_34 = arith.constant 0 : index
    %70 = vector.load %arg5[%c0_33, %c0_34] : memref<8x128xf32, #tpu.memory_space<vmem>>, vector<8x128xf32>
    tpu.vector_store %arg5[%c0_33, %c0_34], %69 {strides = array<i32>} : memref<8x128xf32, #tpu.memory_space<vmem>>, vector<8x128xf32>,
    return
  }
  func.func @transform_0(%arg0: i32) -> (i32, i32) {
    %c0_i32 = arith.constant 0 : i32
    %c0_i32_0 = arith.constant 0 : i32
    %c0_i32_1 = arith.constant 0 : i32
    return %c0_i32, %c0_i32_0 : i32, i32
  }
  func.func @transform_1(%arg0: i32) -> (i32, i32, i32) {
    %c0_i32 = arith.constant 0 : i32
    %c0_i32_0 = arith.constant 0 : i32
    %c0_i32_1 = arith.constant 0 : i32
    %c0_i32_2 = arith.constant 0 : i32
    return %c0_i32, %c0_i32_0, %c0_i32_1 : i32, i32, i32
  }
  func.func @transform_2(%arg0: i32) -> (i32, i32) {
    %c0_i32 = arith.constant 0 : i32
    %c0_i32_0 = arith.constant 0 : i32
    %c0_i32_1 = arith.constant 0 : i32
    return %c0_i32, %c0_i32_0 : i32, i32
  }
  func.func @transform_3(%arg0: i32) -> (i32, i32) {
    %c0_i32 = arith.constant 0 : i32
    %c0_i32_0 = arith.constant 0 : i32
    %c0_i32_1 = arith.constant 0 : i32
    return %c0_i32, %c0_i32_0 : i32, i32
  }
  func.func @transform_4(%arg0: i32) -> (i32, i32) {
    %c0_i32 = arith.constant 0 : i32
    %c0_i32_0 = arith.constant 0 : i32
    %c0_i32_1 = arith.constant 0 : i32
    return %c0_i32, %c0_i32_0 : i32, i32
  }
}

</mosaic_0001>

<llo_original>
// kernel: conv_transpose_silu.1
$region0: #{conv_transpose_silu.1}
  #allocation0 [shape = 'u32[]', space=smem, size = 0x4, offset = 0x4, fixed_abs, tag = 'smem constant byte address 0x4 - core index']
  #allocation1 [shape = 'u32[144,128]{1,0:T(1,128)}', space=vmem, size = 0x12000, scoped, tag = 'internal scratch']
  %s0 = inlined_call_operand.vmem [shape: f32[60,140], index: 0, kind: input, shape index: {}]
  %s1 = inlined_call_operand.vmem [shape: f32[9,8,60], index: 1, kind: input, shape index: {}]
  %s2 = inlined_call_operand.vmem [shape: f32[8,1], index: 2, kind: input, shape index: {}]
  %s3 = inlined_call_operand.vmem [shape: f32[2,128], index: 3, kind: input, shape index: {}]
  %s4 = inlined_call_operand.vmem [shape: f32[8,128], index: 4, kind: output, shape index: {}]
  %s5 = sld [smem:[#allocation0]]
  $region26: #{conv_transpose_silu.1} parent=0
    _
  %s7 = ssub.s32 1, %s5
  %s8 = scalar_select 0, %s7, %s5
  // Predicated region
  $region2: #{conv_transpose_silu.1} parent=0 // pred_check
    _
  $region3: #{conv_transpose_silu.1} parent=0 // pred_check_branch
    %10 = sbr.rel (0) target = $region5
  $region4: #{conv_transpose_silu.1} parent=0 // pred_region
    _
  $region5: #{conv_transpose_silu.1} parent=0 // pred_fallthru
    _
  // Predicated region
  $region6: #{conv_transpose_silu.1} parent=0 // pred_check
    _
  $region7: #{conv_transpose_silu.1} parent=0 // pred_check_branch
    %12 = sbr.rel (0) target = $region9
  $region8: #{conv_transpose_silu.1} parent=0 // pred_region
    _
  $region9: #{conv_transpose_silu.1} parent=0 // pred_fallthru
    _
  // Predicated region
  $region10: #{conv_transpose_silu.1} parent=0 // pred_check
    _
  $region11: #{conv_transpose_silu.1} parent=0 // pred_check_branch
    %14 = sbr.rel (0) target = $region13
  $region12: #{conv_transpose_silu.1} parent=0 // pred_region
    _
  $region13: #{conv_transpose_silu.1} parent=0 // pred_fallthru
    _
  // Predicated region
  $region14: #{conv_transpose_silu.1} parent=0 // pred_check
    _
  $region15: #{conv_transpose_silu.1} parent=0 // pred_check_branch
    %16 = sbr.rel (0) target = $region17
  $region16: #{conv_transpose_silu.1} parent=0 // pred_region
    _
  $region17: #{conv_transpose_silu.1} parent=0 // pred_fallthru
    _
  %v17 = vld [vmem:[%s0] sm:$0xff]
  %v18 = vld [vmem:[%s0 + $0x8] sm:$0xff]
  %v19 = vld [vmem:[%s0 + $0x10] sm:$0xff]
  %v20 = vld [vmem:[%s0 + $0x18] sm:$0xff]
  %v21 = vld [vmem:[%s0 + $0x20] sm:$0xff]
  %v22 = vld [vmem:[%s0 + $0x28] sm:$0xff]
  %v23 = vld [vmem:[%s0 + $0x30] sm:$0xff]
  %v24 = vld [vmem:[%s0 + $0x38] sm:$0xff]
  %v25 = vld [vmem:[%s0 + $0x40] sm:$0xff]
  %v26 = vld [vmem:[%s0 + $0x48] sm:$0xff]
  %v27 = vld [vmem:[%s0 + $0x50] sm:$0xff]
  %v28 = vld [vmem:[%s0 + $0x58] sm:$0xff]
  %v29 = vld [vmem:[%s0 + $0x60] sm:$0xff]
  %v30 = vld [vmem:[%s0 + $0x68] sm:$0xff]
  %v31 = vld [vmem:[%s0 + $0x70] sm:$0xf]
  %v32 = vld [vmem:[%s0 + $0x78] sm:$0xf]
  %v33 = vld [vmem:[%s3] sm:$0x3]
  %v34 = vld [vmem:[%s2] sm:$0xff]
  %36 = vset.pattern.permute.xlu0 0
  %37 = vperm.xlu0 %36, %v34
  %v38 = vpop.permute.xlu0 %37
  %v40 = vld [vmem:[%s1] sm:$0xff]
  %vm41 = vcmask 490496
  %v43 = vsel %vm41, %v40, 0
  %vm45 = vcmask 1043456
  %v47 = vsel %vm45, %v31, 0
  %49 = vmatprep.subr.mxu0 0.0
  %50 = vmatpush1.msra.mxu0 %v17
  %51 = vmatprep.subr.mxu0 0.0
  %52 = vmatpush1.msra.mxu0 %v19
  %53 = vmatprep.subr.mxu0 0.0
  %54 = vmatpush1.msra.mxu0 %v21
  %55 = vmatprep.subr.mxu0 0.0
  %56 = vmatpush1.msra.mxu0 %v23
  %57 = vmatprep.subr.mxu0 0.0
  %58 = vmatpush1.msra.mxu0 %v25
  %59 = vmatprep.subr.mxu0 0.0
  %60 = vmatpush1.msra.mxu0 %v27
  %61 = vmatprep.subr.mxu0 0.0
  %62 = vmatpush1.msra.mxu0 %v29
  %63 = vmatprep.subr.mxu0 0.0
  %64 = vmatpush1.msra.mxu0 %v47
  %65 = vmatprep.subr.mxu0 0.0
  %66 = vmatpush1.msra.mxu0 0.0
  %67 = vmatprep.subr.mxu0 0.0
  %68 = vmatpush1.msra.mxu0 0.0
  %69 = vmatprep.subr.mxu0 0.0
  %70 = vmatpush1.msra.mxu0 0.0
  %71 = vmatprep.subr.mxu0 0.0
  %72 = vmatpush1.msra.mxu0 0.0
  %73 = vmatprep.subr.mxu0 0.0
  %74 = vmatpush1.msra.mxu0 0.0
  %75 = vmatprep.subr.mxu0 0.0
  %76 = vmatpush1.msra.mxu0 0.0
  %77 = vmatprep.subr.mxu0 0.0
  %78 = vmatpush1.msra.mxu0 0.0
  %79 = vmatprep.subr.mxu0 0.0
  %80 = vmatpush1.msra.mxu0 0.0
  %81 = vmatprep.subr.mxu0 0.0
  %82 = vmatpush1.msra.mxu0 0.0
  %83 = vmatprep.subr.mxu0 0.0
  %84 = vmatpush1.msra.mxu0 0.0
  %85 = vmatprep.subr.mxu0 0.0
  %86 = vmatpush1.msra.mxu0 0.0
  %87 = vmatprep.subr.mxu0 0.0
  %88 = vmatpush1.msra.mxu0 0.0
  %89 = vmatprep.subr.mxu0 0.0
  %90 = vmatpush1.msra.mxu0 0.0
  %91 = vmatprep.subr.mxu0 0.0
  %92 = vmatpush1.msra.mxu0 0.0
  %93 = vmatprep.subr.mxu0 0.0
  %94 = vmatpush1.msra.mxu0 0.0
  %95 = vmatprep.subr.mxu0 0.0
  %96 = vmatpush1.msra.mxu0 0.0
  %97 = vmatprep.subr.mxu0 0.0
  %98 = vmatpush1.msra.mxu0 0.0
  %99 = vmatprep.subr.mxu0 0.0
  %100 = vmatpush1.msra.mxu0 0.0
  %101 = vmatprep.subr.mxu0 0.0
  %102 = vmatpush1.msra.mxu0 0.0
  %103 = vmatprep.subr.mxu0 0.0
  %104 = vmatpush1.msra.mxu0 0.0
  %105 = vmatprep.subr.mxu0 0.0
  %106 = vmatpush1.msra.mxu0 0.0
  %107 = vmatprep.subr.mxu0 0.0
  %108 = vmatpush1.msra.mxu0 0.0
  %109 = vmatprep.subr.mxu0 0.0
  %110 = vmatpush1.msra.mxu0 0.0
  %111 = vmatprep.subr.mxu0 0.0
  %112 = vmatpush1.msra.mxu0 0.0
  %113 = vmatprep.mubr.f32.mxu0 0.0
  %114 = vmatmul.mubr.f32.gmra.mrb[0].mxu0 %v43
  %v115 = vpop.f32.mrb[0].mxu0
  %v116 = vadd.f32 0.0, %v115
  %v117 = vpop.f32.mrb[0].mxu0
  %118 = vdwg.mxu0
  %v119 = vlaneseq
  %v120 = vshrl.u32 %v119, 7
  %v121 = vsub.s32 0, %v120
  %v122 = vrot.slane %v33, %v121
  %v123 = vmul.f32 %v116, %v122
  %v124 = vadd.f32 %v38, %v123
  %s125 = scalar_lea.vmem %s1, 8
  %v126 = vld [vmem:[%s125] sm:$0xff]
  %142 = vrot.lane.b32.xlu0 %v17, 127
  %v143 = vpop.permute.xlu0 %142
  %144 = vrot.lane.b32.xlu0 %v18, 127
  %v145 = vpop.permute.xlu0 %144
  %146 = vrot.lane.b32.xlu0 %v19, 127
  %v147 = vpop.permute.xlu0 %146
  %148 = vrot.lane.b32.xlu0 %v20, 127
  %v149 = vpop.permute.xlu0 %148
  %150 = vrot.lane.b32.xlu0 %v21, 127
  %v151 = vpop.permute.xlu0 %150
  %152 = vrot.lane.b32.xlu0 %v22, 127
  %v153 = vpop.permute.xlu0 %152
  %154 = vrot.lane.b32.xlu0 %v23, 127
  %v155 = vpop.permute.xlu0 %154
  %156 = vrot.lane.b32.xlu0 %v24, 127
  %v157 = vpop.permute.xlu0 %156
  %158 = vrot.lane.b32.xlu0 %v25, 127
  %v159 = vpop.permute.xlu0 %158
  %160 = vrot.lane.b32.xlu0 %v26, 127
  %v161 = vpop.permute.xlu0 %160
  %162 = vrot.lane.b32.xlu0 %v27, 127
  %v163 = vpop.permute.xlu0 %162
  %164 = vrot.lane.b32.xlu0 %v28, 127
  %v165 = vpop.permute.xlu0 %164
  %166 = vrot.lane.b32.xlu0 %v29, 127
  %v167 = vpop.permute.xlu0 %166
  %168 = vrot.lane.b32.xlu0 %v30, 127
  %v169 = vpop.permute.xlu0 %168
  %170 = vrot.lane.b32.xlu0 %v31, 127
  %v171 = vpop.permute.xlu0 %170
  %172 = vrot.lane.b32.xlu0 %v32, 127
  %v173 = vpop.permute.xlu0 %172
  %vm174 = vcmask 1039360
  %v175 = vsel %vm174, %v143, %v145
  %v176 = vsel %vm174, %v147, %v149
  %v177 = vsel %vm174, %v151, %v153
  %v178 = vsel %vm174, %v155, %v157
  %v179 = vsel %vm174, %v159, %v161
  %v180 = vsel %vm174, %v163, %v165
  %v181 = vsel %vm174, %v167, %v169
  %v182 = vsel %vm174, %v171, %v173
  %v191 = vsel %vm41, %v126, 0
  %v193 = vsel %vm45, %v182, 0
  %195 = vmatprep.subr.mxu0 0.0
  %196 = vmatpush1.msra.mxu0 %v175
  %197 = vmatprep.subr.mxu0 0.0
  %198 = vmatpush1.msra.mxu0 %v176
  %199 = vmatprep.subr.mxu0 0.0
  %200 = vmatpush1.msra.mxu0 %v177
  %201 = vmatprep.subr.mxu0 0.0
  %202 = vmatpush1.msra.mxu0 %v178
  %203 = vmatprep.subr.mxu0 0.0
  %204 = vmatpush1.msra.mxu0 %v179
  %205 = vmatprep.subr.mxu0 0.0
  %206 = vmatpush1.msra.mxu0 %v180
  %207 = vmatprep.subr.mxu0 0.0
  %208 = vmatpush1.msra.mxu0 %v181
  %209 = vmatprep.subr.mxu0 0.0
  %210 = vmatpush1.msra.mxu0 %v193
  %211 = vmatprep.subr.mxu0 0.0
  %212 = vmatpush1.msra.mxu0 0.0
  %213 = vmatprep.subr.mxu0 0.0
  %214 = vmatpush1.msra.mxu0 0.0
  %215 = vmatprep.subr.mxu0 0.0
  %216 = vmatpush1.msra.mxu0 0.0
  %217 = vmatprep.subr.mxu0 0.0
  %218 = vmatpush1.msra.mxu0 0.0
  %219 = vmatprep.subr.mxu0 0.0
  %220 = vmatpush1.msra.mxu0 0.0
  %221 = vmatprep.subr.mxu0 0.0
  %222 = vmatpush1.msra.mxu0 0.0
  %223 = vmatprep.subr.mxu0 0.0
  %224 = vmatpush1.msra.mxu0 0.0
  %225 = vmatprep.subr.mxu0 0.0
  %226 = vmatpush1.msra.mxu0 0.0
  %227 = vmatprep.subr.mxu0 0.0
  %228 = vmatpush1.msra.mxu0 0.0
  %229 = vmatprep.subr.mxu0 0.0
  %230 = vmatpush1.msra.mxu0 0.0
  %231 = vmatprep.subr.mxu0 0.0
  %232 = vmatpush1.msra.mxu0 0.0
  %233 = vmatprep.subr.mxu0 0.0
  %234 = vmatpush1.msra.mxu0 0.0
  %235 = vmatprep.subr.mxu0 0.0
  %236 = vmatpush1.msra.mxu0 0.0
  %237 = vmatprep.subr.mxu0 0.0
  %238 = vmatpush1.msra.mxu0 0.0
  %239 = vmatprep.subr.mxu0 0.0
  %240 = vmatpush1.msra.mxu0 0.0
  %241 = vmatprep.subr.mxu0 0.0
  %242 = vmatpush1.msra.mxu0 0.0
  %243 = vmatprep.subr.mxu0 0.0
  %244 = vmatpush1.msra.mxu0 0.0
  %245 = vmatprep.subr.mxu0 0.0
  %246 = vmatpush1.msra.mxu0 0.0
  %247 = vmatprep.subr.mxu0 0.0
  %248 = vmatpush1.msra.mxu0 0.0
  %249 = vmatprep.subr.mxu0 0.0
  %250 = vmatpush1.msra.mxu0 0.0
  %251 = vmatprep.subr.mxu0 0.0
  %252 = vmatpush1.msra.mxu0 0.0
  %253 = vmatprep.subr.mxu0 0.0
  %254 = vmatpush1.msra.mxu0 0.0
  %255 = vmatprep.subr.mxu0 0.0
  %256 = vmatpush1.msra.mxu0 0.0
  %257 = vmatprep.subr.mxu0 0.0
  %258 = vmatpush1.msra.mxu0 0.0
  %259 = vmatprep.mubr.f32.mxu0 0.0
  %260 = vmatmul.mubr.f32.gmra.mrb[0].mxu0 %v191
  %v261 = vpop.f32.mrb[0].mxu0
  %v262 = vadd.f32 0.0, %v261
  %v263 = vpop.f32.mrb[0].mxu0
  %264 = vdwg.mxu0
  %v265 = vadd.f32 %v124, %v262
  %s266 = scalar_lea.vmem %s1, 16
  %v267 = vld [vmem:[%s266] sm:$0xff]
  %268 = vrot.lane.b32.xlu0 %v17, 126
  %v269 = vpop.permute.xlu0 %268
  %270 = vrot.lane.b32.xlu0 %v18, 126
  %v271 = vpop.permute.xlu0 %270
  %272 = vrot.lane.b32.xlu0 %v19, 126
  %v273 = vpop.permute.xlu0 %272
  %274 = vrot.lane.b32.xlu0 %v20, 126
  %v275 = vpop.permute.xlu0 %274
  %276 = vrot.lane.b32.xlu0 %v21, 126
  %v277 = vpop.permute.xlu0 %276
  %278 = vrot.lane.b32.xlu0 %v22, 126
  %v279 = vpop.permute.xlu0 %278
  %280 = vrot.lane.b32.xlu0 %v23, 126
  %v281 = vpop.permute.xlu0 %280
  %282 = vrot.lane.b32.xlu0 %v24, 126
  %v283 = vpop.permute.xlu0 %282
  %284 = vrot.lane.b32.xlu0 %v25, 126
  %v285 = vpop.permute.xlu0 %284
  %286 = vrot.lane.b32.xlu0 %v26, 126
  %v287 = vpop.permute.xlu0 %286
  %288 = vrot.lane.b32.xlu0 %v27, 126
  %v289 = vpop.permute.xlu0 %288
  %290 = vrot.lane.b32.xlu0 %v28, 126
  %v291 = vpop.permute.xlu0 %290
  %292 = vrot.lane.b32.xlu0 %v29, 126
  %v293 = vpop.permute.xlu0 %292
  %294 = vrot.lane.b32.xlu0 %v30, 126
  %v295 = vpop.permute.xlu0 %294
  %296 = vrot.lane.b32.xlu0 %v31, 126
  %v297 = vpop.permute.xlu0 %296
  %298 = vrot.lane.b32.xlu0 %v32, 126
  %v299 = vpop.permute.xlu0 %298
  %vm300 = vcmask 1031168
  %v301 = vsel %vm300, %v269, %v271
  %v302 = vsel %vm300, %v273, %v275
  %v303 = vsel %vm300, %v277, %v279
  %v304 = vsel %vm300, %v281, %v283
  %v305 = vsel %vm300, %v285, %v287
  %v306 = vsel %vm300, %v289, %v291
  %v307 = vsel %vm300, %v293, %v295
  %v308 = vsel %vm300, %v297, %v299
  %v317 = vsel %vm41, %v267, 0
  %v319 = vsel %vm45, %v308, 0
  %321 = vmatprep.subr.mxu0 0.0
  %322 = vmatpush1.msra.mxu0 %v301
  %323 = vmatprep.subr.mxu0 0.0
  %324 = vmatpush1.msra.mxu0 %v302
  %325 = vmatprep.subr.mxu0 0.0
  %326 = vmatpush1.msra.mxu0 %v303
  %327 = vmatprep.subr.mxu0 0.0
  %328 = vmatpush1.msra.mxu0 %v304
  %329 = vmatprep.subr.mxu0 0.0
  %330 = vmatpush1.msra.mxu0 %v305
  %331 = vmatprep.subr.mxu0 0.0
  %332 = vmatpush1.msra.mxu0 %v306
  %333 = vmatprep.subr.mxu0 0.0
  %334 = vmatpush1.msra.mxu0 %v307
  %335 = vmatprep.subr.mxu0 0.0
  %336 = vmatpush1.msra.mxu0 %v319
  %337 = vmatprep.subr.mxu0 0.0
  %338 = vmatpush1.msra.mxu0 0.0
  %339 = vmatprep.subr.mxu0 0.0
  %340 = vmatpush1.msra.mxu0 0.0
  %341 = vmatprep.subr.mxu0 0.0
  %342 = vmatpush1.msra.mxu0 0.0
  %343 = vmatprep.subr.mxu0 0.0
  %344 = vmatpush1.msra.mxu0 0.0
  %345 = vmatprep.subr.mxu0 0.0
  %346 = vmatpush1.msra.mxu0 0.0
  %347 = vmatprep.subr.mxu0 0.0
  %348 = vmatpush1.msra.mxu0 0.0
  %349 = vmatprep.subr.mxu0 0.0
  %350 = vmatpush1.msra.mxu0 0.0
  %351 = vmatprep.subr.mxu0 0.0
  %352 = vmatpush1.msra.mxu0 0.0
  %353 = vmatprep.subr.mxu0 0.0
  %354 = vmatpush1.msra.mxu0 0.0
  %355 = vmatprep.subr.mxu0 0.0
  %356 = vmatpush1.msra.mxu0 0.0
  %357 = vmatprep.subr.mxu0 0.0
  %358 = vmatpush1.msra.mxu0 0.0
  %359 = vmatprep.subr.mxu0 0.0
  %360 = vmatpush1.msra.mxu0 0.0
  %361 = vmatprep.subr.mxu0 0.0
  %362 = vmatpush1.msra.mxu0 0.0
  %363 = vmatprep.subr.mxu0 0.0
  %364 = vmatpush1.msra.mxu0 0.0
  %365 = vmatprep.subr.mxu0 0.0
  %366 = vmatpush1.msra.mxu0 0.0
  %367 = vmatprep.subr.mxu0 0.0
  %368 = vmatpush1.msra.mxu0 0.0
  %369 = vmatprep.subr.mxu0 0.0
  %370 = vmatpush1.msra.mxu0 0.0
  %371 = vmatprep.subr.mxu0 0.0
  %372 = vmatpush1.msra.mxu0 0.0
  %373 = vmatprep.subr.mxu0 0.0
  %374 = vmatpush1.msra.mxu0 0.0
  %375 = vmatprep.subr.mxu0 0.0
  %376 = vmatpush1.msra.mxu0 0.0
  %377 = vmatprep.subr.mxu0 0.0
  %378 = vmatpush1.msra.mxu0 0.0
  %379 = vmatprep.subr.mxu0 0.0
  %380 = vmatpush1.msra.mxu0 0.0
  %381 = vmatprep.subr.mxu0 0.0
  %382 = vmatpush1.msra.mxu0 0.0
  %383 = vmatprep.subr.mxu0 0.0
  %384 = vmatpush1.msra.mxu0 0.0
  %385 = vmatprep.mubr.f32.mxu0 0.0
  %386 = vmatmul.mubr.f32.gmra.mrb[0].mxu0 %v317
  %v387 = vpop.f32.mrb[0].mxu0
  %v388 = vadd.f32 0.0, %v387
  %v389 = vpop.f32.mrb[0].mxu0
  %390 = vdwg.mxu0
  %v391 = vlaneseq
  %v392 = vshrl.u32 %v391, 7
  %v393 = vsub.s32 1, %v392
  %v394 = vrot.slane %v33, %v393
  %v395 = vmul.f32 %v388, %v394
  %v396 = vadd.f32 %v265, %v395
  %s397 = scalar_lea.vmem %s1, 24
  %v398 = vld [vmem:[%s397] sm:$0xff]
  %399 = vrot.lane.b32.xlu0 %v17, 123
  %v400 = vpop.permute.xlu0 %399
  %401 = vrot.lane.b32.xlu0 %v18, 123
  %v402 = vpop.permute.xlu0 %401
  %403 = vrot.lane.b32.xlu0 %v19, 123
  %v404 = vpop.permute.xlu0 %403
  %405 = vrot.lane.b32.xlu0 %v20, 123
  %v406 = vpop.permute.xlu0 %405
  %407 = vrot.lane.b32.xlu0 %v21, 123
  %v408 = vpop.permute.xlu0 %407
  %409 = vrot.lane.b32.xlu0 %v22, 123
  %v410 = vpop.permute.xlu0 %409
  %411 = vrot.lane.b32.xlu0 %v23, 123
  %v412 = vpop.permute.xlu0 %411
  %413 = vrot.lane.b32.xlu0 %v24, 123
  %v414 = vpop.permute.xlu0 %413
  %415 = vrot.lane.b32.xlu0 %v25, 123
  %v416 = vpop.permute.xlu0 %415
  %417 = vrot.lane.b32.xlu0 %v26, 123
  %v418 = vpop.permute.xlu0 %417
  %419 = vrot.lane.b32.xlu0 %v27, 123
  %v420 = vpop.permute.xlu0 %419
  %421 = vrot.lane.b32.xlu0 %v28, 123
  %v422 = vpop.permute.xlu0 %421
  %423 = vrot.lane.b32.xlu0 %v29, 123
  %v424 = vpop.permute.xlu0 %423
  %425 = vrot.lane.b32.xlu0 %v30, 123
  %v426 = vpop.permute.xlu0 %425
  %427 = vrot.lane.b32.xlu0 %v31, 123
  %v428 = vpop.permute.xlu0 %427
  %429 = vrot.lane.b32.xlu0 %v32, 123
  %v430 = vpop.permute.xlu0 %429
  %vm431 = vcmask 1006592
  %v432 = vsel %vm431, %v400, %v402
  %v433 = vsel %vm431, %v404, %v406
  %v434 = vsel %vm431, %v408, %v410
  %v435 = vsel %vm431, %v412, %v414
  %v436 = vsel %vm431, %v416, %v418
  %v437 = vsel %vm431, %v420, %v422
  %v438 = vsel %vm431, %v424, %v426
  %v439 = vsel %vm431, %v428, %v430
  %v448 = vsel %vm41, %v398, 0
  %v450 = vsel %vm45, %v439, 0
  %452 = vmatprep.subr.mxu0 0.0
  %453 = vmatpush1.msra.mxu0 %v432
  %454 = vmatprep.subr.mxu0 0.0
  %455 = vmatpush1.msra.mxu0 %v433
  %456 = vmatprep.subr.mxu0 0.0
  %457 = vmatpush1.msra.mxu0 %v434
  %458 = vmatprep.subr.mxu0 0.0
  %459 = vmatpush1.msra.mxu0 %v435
  %460 = vmatprep.subr.mxu0 0.0
  %461 = vmatpush1.msra.mxu0 %v436
  %462 = vmatprep.subr.mxu0 0.0
  %463 = vmatpush1.msra.mxu0 %v437
  %464 = vmatprep.subr.mxu0 0.0
  %465 = vmatpush1.msra.mxu0 %v438
  %466 = vmatprep.subr.mxu0 0.0
  %467 = vmatpush1.msra.mxu0 %v450
  %468 = vmatprep.subr.mxu0 0.0
  %469 = vmatpush1.msra.mxu0 0.0
  %470 = vmatprep.subr.mxu0 0.0
  %471 = vmatpush1.msra.mxu0 0.0
  %472 = vmatprep.subr.mxu0 0.0
  %473 = vmatpush1.msra.mxu0 0.0
  %474 = vmatprep.subr.mxu0 0.0
  %475 = vmatpush1.msra.mxu0 0.0
  %476 = vmatprep.subr.mxu0 0.0
  %477 = vmatpush1.msra.mxu0 0.0
  %478 = vmatprep.subr.mxu0 0.0
  %479 = vmatpush1.msra.mxu0 0.0
  %480 = vmatprep.subr.mxu0 0.0
  %481 = vmatpush1.msra.mxu0 0.0
  %482 = vmatprep.subr.mxu0 0.0
  %483 = vmatpush1.msra.mxu0 0.0
  %484 = vmatprep.subr.mxu0 0.0
  %485 = vmatpush1.msra.mxu0 0.0
  %486 = vmatprep.subr.mxu0 0.0
  %487 = vmatpush1.msra.mxu0 0.0
  %488 = vmatprep.subr.mxu0 0.0
  %489 = vmatpush1.msra.mxu0 0.0
  %490 = vmatprep.subr.mxu0 0.0
  %491 = vmatpush1.msra.mxu0 0.0
  %492 = vmatprep.subr.mxu0 0.0
  %493 = vmatpush1.msra.mxu0 0.0
  %494 = vmatprep.subr.mxu0 0.0
  %495 = vmatpush1.msra.mxu0 0.0
  %496 = vmatprep.subr.mxu0 0.0
  %497 = vmatpush1.msra.mxu0 0.0
  %498 = vmatprep.subr.mxu0 0.0
  %499 = vmatpush1.msra.mxu0 0.0
  %500 = vmatprep.subr.mxu0 0.0
  %501 = vmatpush1.msra.mxu0 0.0
  %502 = vmatprep.subr.mxu0 0.0
  %503 = vmatpush1.msra.mxu0 0.0
  %504 = vmatprep.subr.mxu0 0.0
  %505 = vmatpush1.msra.mxu0 0.0
  %506 = vmatprep.subr.mxu0 0.0
  %507 = vmatpush1.msra.mxu0 0.0
  %508 = vmatprep.subr.mxu0 0.0
  %509 = vmatpush1.msra.mxu0 0.0
  %510 = vmatprep.subr.mxu0 0.0
  %511 = vmatpush1.msra.mxu0 0.0
  %512 = vmatprep.subr.mxu0 0.0
  %513 = vmatpush1.msra.mxu0 0.0
  %514 = vmatprep.subr.mxu0 0.0
  %515 = vmatpush1.msra.mxu0 0.0
  %516 = vmatprep.mubr.f32.mxu0 0.0
  %517 = vmatmul.mubr.f32.gmra.mrb[0].mxu0 %v448
  %v518 = vpop.f32.mrb[0].mxu0
  %v519 = vadd.f32 0.0, %v518
  %v520 = vpop.f32.mrb[0].mxu0
  %521 = vdwg.mxu0
  %v522 = vmul.f32 %v519, %v122
  %v523 = vadd.f32 %v396, %v522
  %s524 = scalar_lea.vmem %s1, 32
  %v525 = vld [vmem:[%s524] sm:$0xff]
  %526 = vrot.lane.b32.xlu0 %v17, 122
  %v527 = vpop.permute.xlu0 %526
  %528 = vrot.lane.b32.xlu0 %v18, 122
  %v529 = vpop.permute.xlu0 %528
  %530 = vrot.lane.b32.xlu0 %v19, 122
  %v531 = vpop.permute.xlu0 %530
  %532 = vrot.lane.b32.xlu0 %v20, 122
  %v533 = vpop.permute.xlu0 %532
  %534 = vrot.lane.b32.xlu0 %v21, 122
  %v535 = vpop.permute.xlu0 %534
  %536 = vrot.lane.b32.xlu0 %v22, 122
  %v537 = vpop.permute.xlu0 %536
  %538 = vrot.lane.b32.xlu0 %v23, 122
  %v539 = vpop.permute.xlu0 %538
  %540 = vrot.lane.b32.xlu0 %v24, 122
  %v541 = vpop.permute.xlu0 %540
  %542 = vrot.lane.b32.xlu0 %v25, 122
  %v543 = vpop.permute.xlu0 %542
  %544 = vrot.lane.b32.xlu0 %v26, 122
  %v545 = vpop.permute.xlu0 %544
  %546 = vrot.lane.b32.xlu0 %v27, 122
  %v547 = vpop.permute.xlu0 %546
  %548 = vrot.lane.b32.xlu0 %v28, 122
  %v549 = vpop.permute.xlu0 %548
  %550 = vrot.lane.b32.xlu0 %v29, 122
  %v551 = vpop.permute.xlu0 %550
  %552 = vrot.lane.b32.xlu0 %v30, 122
  %v553 = vpop.permute.xlu0 %552
  %554 = vrot.lane.b32.xlu0 %v31, 122
  %v555 = vpop.permute.xlu0 %554
  %556 = vrot.lane.b32.xlu0 %v32, 122
  %v557 = vpop.permute.xlu0 %556
  %vm558 = vcmask 998400
  %v559 = vsel %vm558, %v527, %v529
  %v560 = vsel %vm558, %v531, %v533
  %v561 = vsel %vm558, %v535, %v537
  %v562 = vsel %vm558, %v539, %v541
  %v563 = vsel %vm558, %v543, %v545
  %v564 = vsel %vm558, %v547, %v549
  %v565 = vsel %vm558, %v551, %v553
  %v566 = vsel %vm558, %v555, %v557
  %v575 = vsel %vm41, %v525, 0
  %v577 = vsel %vm45, %v566, 0
  %579 = vmatprep.subr.mxu0 0.0
  %580 = vmatpush1.msra.mxu0 %v559
  %581 = vmatprep.subr.mxu0 0.0
  %582 = vmatpush1.msra.mxu0 %v560
  %583 = vmatprep.subr.mxu0 0.0
  %584 = vmatpush1.msra.mxu0 %v561
  %585 = vmatprep.subr.mxu0 0.0
  %586 = vmatpush1.msra.mxu0 %v562
  %587 = vmatprep.subr.mxu0 0.0
  %588 = vmatpush1.msra.mxu0 %v563
  %589 = vmatprep.subr.mxu0 0.0
  %590 = vmatpush1.msra.mxu0 %v564
  %591 = vmatprep.subr.mxu0 0.0
  %592 = vmatpush1.msra.mxu0 %v565
  %593 = vmatprep.subr.mxu0 0.0
  %594 = vmatpush1.msra.mxu0 %v577
  %595 = vmatprep.subr.mxu0 0.0
  %596 = vmatpush1.msra.mxu0 0.0
  %597 = vmatprep.subr.mxu0 0.0
  %598 = vmatpush1.msra.mxu0 0.0
  %599 = vmatprep.subr.mxu0 0.0
  %600 = vmatpush1.msra.mxu0 0.0
  %601 = vmatprep.subr.mxu0 0.0
  %602 = vmatpush1.msra.mxu0 0.0
  %603 = vmatprep.subr.mxu0 0.0
  %604 = vmatpush1.msra.mxu0 0.0
  %605 = vmatprep.subr.mxu0 0.0
  %606 = vmatpush1.msra.mxu0 0.0
  %607 = vmatprep.subr.mxu0 0.0
  %608 = vmatpush1.msra.mxu0 0.0
  %609 = vmatprep.subr.mxu0 0.0
  %610 = vmatpush1.msra.mxu0 0.0
  %611 = vmatprep.subr.mxu0 0.0
  %612 = vmatpush1.msra.mxu0 0.0
  %613 = vmatprep.subr.mxu0 0.0
  %614 = vmatpush1.msra.mxu0 0.0
  %615 = vmatprep.subr.mxu0 0.0
  %616 = vmatpush1.msra.mxu0 0.0
  %617 = vmatprep.subr.mxu0 0.0
  %618 = vmatpush1.msra.mxu0 0.0
  %619 = vmatprep.subr.mxu0 0.0
  %620 = vmatpush1.msra.mxu0 0.0
  %621 = vmatprep.subr.mxu0 0.0
  %622 = vmatpush1.msra.mxu0 0.0
  %623 = vmatprep.subr.mxu0 0.0
  %624 = vmatpush1.msra.mxu0 0.0
  %625 = vmatprep.subr.mxu0 0.0
  %626 = vmatpush1.msra.mxu0 0.0
  %627 = vmatprep.subr.mxu0 0.0
  %628 = vmatpush1.msra.mxu0 0.0
  %629 = vmatprep.subr.mxu0 0.0
  %630 = vmatpush1.msra.mxu0 0.0
  %631 = vmatprep.subr.mxu0 0.0
  %632 = vmatpush1.msra.mxu0 0.0
  %633 = vmatprep.subr.mxu0 0.0
  %634 = vmatpush1.msra.mxu0 0.0
  %635 = vmatprep.subr.mxu0 0.0
  %636 = vmatpush1.msra.mxu0 0.0
  %637 = vmatprep.subr.mxu0 0.0
  %638 = vmatpush1.msra.mxu0 0.0
  %639 = vmatprep.subr.mxu0 0.0
  %640 = vmatpush1.msra.mxu0 0.0
  %641 = vmatprep.subr.mxu0 0.0
  %642 = vmatpush1.msra.mxu0 0.0
  %643 = vmatprep.mubr.f32.mxu0 0.0
  %644 = vmatmul.mubr.f32.gmra.mrb[0].mxu0 %v575
  %v645 = vpop.f32.mrb[0].mxu0
  %v646 = vadd.f32 0.0, %v645
  %v647 = vpop.f32.mrb[0].mxu0
  %648 = vdwg.mxu0
  %v649 = vadd.f32 %v523, %v646
  %s650 = scalar_lea.vmem %s1, 40
  %v651 = vld [vmem:[%s650] sm:$0xff]
  %652 = vrot.lane.b32.xlu0 %v17, 121
  %v653 = vpop.permute.xlu0 %652
  %654 = vrot.lane.b32.xlu0 %v18, 121
  %v655 = vpop.permute.xlu0 %654
  %656 = vrot.lane.b32.xlu0 %v19, 121
  %v657 = vpop.permute.xlu0 %656
  %658 = vrot.lane.b32.xlu0 %v20, 121
  %v659 = vpop.permute.xlu0 %658
  %660 = vrot.lane.b32.xlu0 %v21, 121
  %v661 = vpop.permute.xlu0 %660
  %662 = vrot.lane.b32.xlu0 %v22, 121
  %v663 = vpop.permute.xlu0 %662
  %664 = vrot.lane.b32.xlu0 %v23, 121
  %v665 = vpop.permute.xlu0 %664
  %666 = vrot.lane.b32.xlu0 %v24, 121
  %v667 = vpop.permute.xlu0 %666
  %668 = vrot.lane.b32.xlu0 %v25, 121
  %v669 = vpop.permute.xlu0 %668
  %670 = vrot.lane.b32.xlu0 %v26, 121
  %v671 = vpop.permute.xlu0 %670
  %672 = vrot.lane.b32.xlu0 %v27, 121
  %v673 = vpop.permute.xlu0 %672
  %674 = vrot.lane.b32.xlu0 %v28, 121
  %v675 = vpop.permute.xlu0 %674
  %676 = vrot.lane.b32.xlu0 %v29, 121
  %v677 = vpop.permute.xlu0 %676
  %678 = vrot.lane.b32.xlu0 %v30, 121
  %v679 = vpop.permute.xlu0 %678
  %680 = vrot.lane.b32.xlu0 %v31, 121
  %v681 = vpop.permute.xlu0 %680
  %682 = vrot.lane.b32.xlu0 %v32, 121
  %v683 = vpop.permute.xlu0 %682
  %vm684 = vcmask 990208
  %v685 = vsel %vm684, %v653, %v655
  %v686 = vsel %vm684, %v657, %v659
  %v687 = vsel %vm684, %v661, %v663
  %v688 = vsel %vm684, %v665, %v667
  %v689 = vsel %vm684, %v669, %v671
  %v690 = vsel %vm684, %v673, %v675
  %v691 = vsel %vm684, %v677, %v679
  %v692 = vsel %vm684, %v681, %v683
  %v701 = vsel %vm41, %v651, 0
  %v703 = vsel %vm45, %v692, 0
  %705 = vmatprep.subr.mxu0 0.0
  %706 = vmatpush1.msra.mxu0 %v685
  %707 = vmatprep.subr.mxu0 0.0
  %708 = vmatpush1.msra.mxu0 %v686
  %709 = vmatprep.subr.mxu0 0.0
  %710 = vmatpush1.msra.mxu0 %v687
  %711 = vmatprep.subr.mxu0 0.0
  %712 = vmatpush1.msra.mxu0 %v688
  %713 = vmatprep.subr.mxu0 0.0
  %714 = vmatpush1.msra.mxu0 %v689
  %715 = vmatprep.subr.mxu0 0.0
  %716 = vmatpush1.msra.mxu0 %v690
  %717 = vmatprep.subr.mxu0 0.0
  %718 = vmatpush1.msra.mxu0 %v691
  %719 = vmatprep.subr.mxu0 0.0
  %720 = vmatpush1.msra.mxu0 %v703
  %721 = vmatprep.subr.mxu0 0.0
  %722 = vmatpush1.msra.mxu0 0.0
  %723 = vmatprep.subr.mxu0 0.0
  %724 = vmatpush1.msra.mxu0 0.0
  %725 = vmatprep.subr.mxu0 0.0
  %726 = vmatpush1.msra.mxu0 0.0
  %727 = vmatprep.subr.mxu0 0.0
  %728 = vmatpush1.msra.mxu0 0.0
  %729 = vmatprep.subr.mxu0 0.0
  %730 = vmatpush1.msra.mxu0 0.0
  %731 = vmatprep.subr.mxu0 0.0
  %732 = vmatpush1.msra.mxu0 0.0
  %733 = vmatprep.subr.mxu0 0.0
  %734 = vmatpush1.msra.mxu0 0.0
  %735 = vmatprep.subr.mxu0 0.0
  %736 = vmatpush1.msra.mxu0 0.0
  %737 = vmatprep.subr.mxu0 0.0
  %738 = vmatpush1.msra.mxu0 0.0
  %739 = vmatprep.subr.mxu0 0.0
  %740 = vmatpush1.msra.mxu0 0.0
  %741 = vmatprep.subr.mxu0 0.0
  %742 = vmatpush1.msra.mxu0 0.0
  %743 = vmatprep.subr.mxu0 0.0
  %744 = vmatpush1.msra.mxu0 0.0
  %745 = vmatprep.subr.mxu0 0.0
  %746 = vmatpush1.msra.mxu0 0.0
  %747 = vmatprep.subr.mxu0 0.0
  %748 = vmatpush1.msra.mxu0 0.0
  %749 = vmatprep.subr.mxu0 0.0
  %750 = vmatpush1.msra.mxu0 0.0
  %751 = vmatprep.subr.mxu0 0.0
  %752 = vmatpush1.msra.mxu0 0.0
  %753 = vmatprep.subr.mxu0 0.0
  %754 = vmatpush1.msra.mxu0 0.0
  %755 = vmatprep.subr.mxu0 0.0
  %756 = vmatpush1.msra.mxu0 0.0
  %757 = vmatprep.subr.mxu0 0.0
  %758 = vmatpush1.msra.mxu0 0.0
  %759 = vmatprep.subr.mxu0 0.0
  %760 = vmatpush1.msra.mxu0 0.0
  %761 = vmatprep.subr.mxu0 0.0
  %762 = vmatpush1.msra.mxu0 0.0
  %763 = vmatprep.subr.mxu0 0.0
  %764 = vmatpush1.msra.mxu0 0.0
  %765 = vmatprep.subr.mxu0 0.0
  %766 = vmatpush1.msra.mxu0 0.0
  %767 = vmatprep.subr.mxu0 0.0
  %768 = vmatpush1.msra.mxu0 0.0
  %769 = vmatprep.mubr.f32.mxu0 0.0
  %770 = vmatmul.mubr.f32.gmra.mrb[0].mxu0 %v701
  %v771 = vpop.f32.mrb[0].mxu0
  %v772 = vadd.f32 0.0, %v771
  %v773 = vpop.f32.mrb[0].mxu0
  %774 = vdwg.mxu0
  %v775 = vmul.f32 %v772, %v394
  %v776 = vadd.f32 %v649, %v775
  %s777 = scalar_lea.vmem %s1, 48
  %v778 = vld [vmem:[%s777] sm:$0xff]
  %779 = vrot.lane.b32.xlu0 %v17, 118
  %v780 = vpop.permute.xlu0 %779
  %781 = vrot.lane.b32.xlu0 %v18, 118
  %v782 = vpop.permute.xlu0 %781
  %783 = vrot.lane.b32.xlu0 %v19, 118
  %v784 = vpop.permute.xlu0 %783
  %785 = vrot.lane.b32.xlu0 %v20, 118
  %v786 = vpop.permute.xlu0 %785
  %787 = vrot.lane.b32.xlu0 %v21, 118
  %v788 = vpop.permute.xlu0 %787
  %789 = vrot.lane.b32.xlu0 %v22, 118
  %v790 = vpop.permute.xlu0 %789
  %791 = vrot.lane.b32.xlu0 %v23, 118
  %v792 = vpop.permute.xlu0 %791
  %793 = vrot.lane.b32.xlu0 %v24, 118
  %v794 = vpop.permute.xlu0 %793
  %795 = vrot.lane.b32.xlu0 %v25, 118
  %v796 = vpop.permute.xlu0 %795
  %797 = vrot.lane.b32.xlu0 %v26, 118
  %v798 = vpop.permute.xlu0 %797
  %799 = vrot.lane.b32.xlu0 %v27, 118
  %v800 = vpop.permute.xlu0 %799
  %801 = vrot.lane.b32.xlu0 %v28, 118
  %v802 = vpop.permute.xlu0 %801
  %803 = vrot.lane.b32.xlu0 %v29, 118
  %v804 = vpop.permute.xlu0 %803
  %805 = vrot.lane.b32.xlu0 %v30, 118
  %v806 = vpop.permute.xlu0 %805
  %807 = vrot.lane.b32.xlu0 %v31, 118
  %v808 = vpop.permute.xlu0 %807
  %809 = vrot.lane.b32.xlu0 %v32, 118
  %v810 = vpop.permute.xlu0 %809
  %vm811 = vcmask 965632
  %v812 = vsel %vm811, %v780, %v782
  %v813 = vsel %vm811, %v784, %v786
  %v814 = vsel %vm811, %v788, %v790
  %v815 = vsel %vm811, %v792, %v794
  %v816 = vsel %vm811, %v796, %v798
  %v817 = vsel %vm811, %v800, %v802
  %v818 = vsel %vm811, %v804, %v806
  %v819 = vsel %vm811, %v808, %v810
  %v828 = vsel %vm41, %v778, 0
  %v830 = vsel %vm45, %v819, 0
  %832 = vmatprep.subr.mxu0 0.0
  %833 = vmatpush1.msra.mxu0 %v812
  %834 = vmatprep.subr.mxu0 0.0
  %835 = vmatpush1.msra.mxu0 %v813
  %836 = vmatprep.subr.mxu0 0.0
  %837 = vmatpush1.msra.mxu0 %v814
  %838 = vmatprep.subr.mxu0 0.0
  %839 = vmatpush1.msra.mxu0 %v815
  %840 = vmatprep.subr.mxu0 0.0
  %841 = vmatpush1.msra.mxu0 %v816
  %842 = vmatprep.subr.mxu0 0.0
  %843 = vmatpush1.msra.mxu0 %v817
  %844 = vmatprep.subr.mxu0 0.0
  %845 = vmatpush1.msra.mxu0 %v818
  %846 = vmatprep.subr.mxu0 0.0
  %847 = vmatpush1.msra.mxu0 %v830
  %848 = vmatprep.subr.mxu0 0.0
  %849 = vmatpush1.msra.mxu0 0.0
  %850 = vmatprep.subr.mxu0 0.0
  %851 = vmatpush1.msra.mxu0 0.0
  %852 = vmatprep.subr.mxu0 0.0
  %853 = vmatpush1.msra.mxu0 0.0
  %854 = vmatprep.subr.mxu0 0.0
  %855 = vmatpush1.msra.mxu0 0.0
  %856 = vmatprep.subr.mxu0 0.0
  %857 = vmatpush1.msra.mxu0 0.0
  %858 = vmatprep.subr.mxu0 0.0
  %859 = vmatpush1.msra.mxu0 0.0
  %860 = vmatprep.subr.mxu0 0.0
  %861 = vmatpush1.msra.mxu0 0.0
  %862 = vmatprep.subr.mxu0 0.0
  %863 = vmatpush1.msra.mxu0 0.0
  %864 = vmatprep.subr.mxu0 0.0
  %865 = vmatpush1.msra.mxu0 0.0
  %866 = vmatprep.subr.mxu0 0.0
  %867 = vmatpush1.msra.mxu0 0.0
  %868 = vmatprep.subr.mxu0 0.0
  %869 = vmatpush1.msra.mxu0 0.0
  %870 = vmatprep.subr.mxu0 0.0
  %871 = vmatpush1.msra.mxu0 0.0
  %872 = vmatprep.subr.mxu0 0.0
  %873 = vmatpush1.msra.mxu0 0.0
  %874 = vmatprep.subr.mxu0 0.0
  %875 = vmatpush1.msra.mxu0 0.0
  %876 = vmatprep.subr.mxu0 0.0
  %877 = vmatpush1.msra.mxu0 0.0
  %878 = vmatprep.subr.mxu0 0.0
  %879 = vmatpush1.msra.mxu0 0.0
  %880 = vmatprep.subr.mxu0 0.0
  %881 = vmatpush1.msra.mxu0 0.0
  %882 = vmatprep.subr.mxu0 0.0
  %883 = vmatpush1.msra.mxu0 0.0
  %884 = vmatprep.subr.mxu0 0.0
  %885 = vmatpush1.msra.mxu0 0.0
  %886 = vmatprep.subr.mxu0 0.0
  %887 = vmatpush1.msra.mxu0 0.0
  %888 = vmatprep.subr.mxu0 0.0
  %889 = vmatpush1.msra.mxu0 0.0
  %890 = vmatprep.subr.mxu0 0.0
  %891 = vmatpush1.msra.mxu0 0.0
  %892 = vmatprep.subr.mxu0 0.0
  %893 = vmatpush1.msra.mxu0 0.0
  %894 = vmatprep.subr.mxu0 0.0
  %895 = vmatpush1.msra.mxu0 0.0
  %896 = vmatprep.mubr.f32.mxu0 0.0
  %897 = vmatmul.mubr.f32.gmra.mrb[0].mxu0 %v828
  %v898 = vpop.f32.mrb[0].mxu0
  %v899 = vadd.f32 0.0, %v898
  %v900 = vpop.f32.mrb[0].mxu0
  %901 = vdwg.mxu0
  %v902 = vmul.f32 %v899, %v122
  %v903 = vadd.f32 %v776, %v902
  %s904 = scalar_lea.vmem %s1, 56
  %v905 = vld [vmem:[%s904] sm:$0xff]
  %906 = vrot.lane.b32.xlu0 %v17, 117
  %v907 = vpop.permute.xlu0 %906
  %908 = vrot.lane.b32.xlu0 %v18, 117
  %v909 = vpop.permute.xlu0 %908
  %910 = vrot.lane.b32.xlu0 %v19, 117
  %v911 = vpop.permute.xlu0 %910
  %912 = vrot.lane.b32.xlu0 %v20, 117
  %v913 = vpop.permute.xlu0 %912
  %914 = vrot.lane.b32.xlu0 %v21, 117
  %v915 = vpop.permute.xlu0 %914
  %916 = vrot.lane.b32.xlu0 %v22, 117
  %v917 = vpop.permute.xlu0 %916
  %918 = vrot.lane.b32.xlu0 %v23, 117
  %v919 = vpop.permute.xlu0 %918
  %920 = vrot.lane.b32.xlu0 %v24, 117
  %v921 = vpop.permute.xlu0 %920
  %922 = vrot.lane.b32.xlu0 %v25, 117
  %v923 = vpop.permute.xlu0 %922
  %924 = vrot.lane.b32.xlu0 %v26, 117
  %v925 = vpop.permute.xlu0 %924
  %926 = vrot.lane.b32.xlu0 %v27, 117
  %v927 = vpop.permute.xlu0 %926
  %928 = vrot.lane.b32.xlu0 %v28, 117
  %v929 = vpop.permute.xlu0 %928
  %930 = vrot.lane.b32.xlu0 %v29, 117
  %v931 = vpop.permute.xlu0 %930
  %932 = vrot.lane.b32.xlu0 %v30, 117
  %v933 = vpop.permute.xlu0 %932
  %934 = vrot.lane.b32.xlu0 %v31, 117
  %v935 = vpop.permute.xlu0 %934
  %936 = vrot.lane.b32.xlu0 %v32, 117
  %v937 = vpop.permute.xlu0 %936
  %vm938 = vcmask 957440
  %v939 = vsel %vm938, %v907, %v909
  %v940 = vsel %vm938, %v911, %v913
  %v941 = vsel %vm938, %v915, %v917
  %v942 = vsel %vm938, %v919, %v921
  %v943 = vsel %vm938, %v923, %v925
  %v944 = vsel %vm938, %v927, %v929
  %v945 = vsel %vm938, %v931, %v933
  %v946 = vsel %vm938, %v935, %v937
  %v955 = vsel %vm41, %v905, 0
  %v957 = vsel %vm45, %v946, 0
  %959 = vmatprep.subr.mxu0 0.0
  %960 = vmatpush1.msra.mxu0 %v939
  %961 = vmatprep.subr.mxu0 0.0
  %962 = vmatpush1.msra.mxu0 %v940
  %963 = vmatprep.subr.mxu0 0.0
  %964 = vmatpush1.msra.mxu0 %v941
  %965 = vmatprep.subr.mxu0 0.0
  %966 = vmatpush1.msra.mxu0 %v942
  %967 = vmatprep.subr.mxu0 0.0
  %968 = vmatpush1.msra.mxu0 %v943
  %969 = vmatprep.subr.mxu0 0.0
  %970 = vmatpush1.msra.mxu0 %v944
  %971 = vmatprep.subr.mxu0 0.0
  %972 = vmatpush1.msra.mxu0 %v945
  %973 = vmatprep.subr.mxu0 0.0
  %974 = vmatpush1.msra.mxu0 %v957
  %975 = vmatprep.subr.mxu0 0.0
  %976 = vmatpush1.msra.mxu0 0.0
  %977 = vmatprep.subr.mxu0 0.0
  %978 = vmatpush1.msra.mxu0 0.0
  %979 = vmatprep.subr.mxu0 0.0
  %980 = vmatpush1.msra.mxu0 0.0
  %981 = vmatprep.subr.mxu0 0.0
  %982 = vmatpush1.msra.mxu0 0.0
  %983 = vmatprep.subr.mxu0 0.0
  %984 = vmatpush1.msra.mxu0 0.0
  %985 = vmatprep.subr.mxu0 0.0
  %986 = vmatpush1.msra.mxu0 0.0
  %987 = vmatprep.subr.mxu0 0.0
  %988 = vmatpush1.msra.mxu0 0.0
  %989 = vmatprep.subr.mxu0 0.0
  %990 = vmatpush1.msra.mxu0 0.0
  %991 = vmatprep.subr.mxu0 0.0
  %992 = vmatpush1.msra.mxu0 0.0
  %993 = vmatprep.subr.mxu0 0.0
  %994 = vmatpush1.msra.mxu0 0.0
  %995 = vmatprep.subr.mxu0 0.0
  %996 = vmatpush1.msra.mxu0 0.0
  %997 = vmatprep.subr.mxu0 0.0
  %998 = vmatpush1.msra.mxu0 0.0
  %999 = vmatprep.subr.mxu0 0.0
  %1000 = vmatpush1.msra.mxu0 0.0
  %1001 = vmatprep.subr.mxu0 0.0
  %1002 = vmatpush1.msra.mxu0 0.0
  %1003 = vmatprep.subr.mxu0 0.0
  %1004 = vmatpush1.msra.mxu0 0.0
  %1005 = vmatprep.subr.mxu0 0.0
  %1006 = vmatpush1.msra.mxu0 0.0
  %1007 = vmatprep.subr.mxu0 0.0
  %1008 = vmatpush1.msra.mxu0 0.0
  %1009 = vmatprep.subr.mxu0 0.0
  %1010 = vmatpush1.msra.mxu0 0.0
  %1011 = vmatprep.subr.mxu0 0.0
  %1012 = vmatpush1.msra.mxu0 0.0
  %1013 = vmatprep.subr.mxu0 0.0
  %1014 = vmatpush1.msra.mxu0 0.0
  %1015 = vmatprep.subr.mxu0 0.0
  %1016 = vmatpush1.msra.mxu0 0.0
  %1017 = vmatprep.subr.mxu0 0.0
  %1018 = vmatpush1.msra.mxu0 0.0
  %1019 = vmatprep.subr.mxu0 0.0
  %1020 = vmatpush1.msra.mxu0 0.0
  %1021 = vmatprep.subr.mxu0 0.0
  %1022 = vmatpush1.msra.mxu0 0.0
  %1023 = vmatprep.mubr.f32.mxu0 0.0
  %1024 = vmatmul.mubr.f32.gmra.mrb[0].mxu0 %v955
  %v1025 = vpop.f32.mrb[0].mxu0
  %v1026 = vadd.f32 0.0, %v1025
  %v1027 = vpop.f32.mrb[0].mxu0
  %1028 = vdwg.mxu0
  %v1029 = vadd.f32 %v903, %v1026
  %s1030 = scalar_lea.vmem %s1, 64
  %v1031 = vld [vmem:[%s1030] sm:$0xff]
  %1032 = vrot.lane.b32.xlu0 %v17, 116
  %v1033 = vpop.permute.xlu0 %1032
  %1034 = vrot.lane.b32.xlu0 %v18, 116
  %v1035 = vpop.permute.xlu0 %1034
  %1036 = vrot.lane.b32.xlu0 %v19, 116
  %v1037 = vpop.permute.xlu0 %1036
  %1038 = vrot.lane.b32.xlu0 %v20, 116
  %v1039 = vpop.permute.xlu0 %1038
  %1040 = vrot.lane.b32.xlu0 %v21, 116
  %v1041 = vpop.permute.xlu0 %1040
  %1042 = vrot.lane.b32.xlu0 %v22, 116
  %v1043 = vpop.permute.xlu0 %1042
  %1044 = vrot.lane.b32.xlu0 %v23, 116
  %v1045 = vpop.permute.xlu0 %1044
  %1046 = vrot.lane.b32.xlu0 %v24, 116
  %v1047 = vpop.permute.xlu0 %1046
  %1048 = vrot.lane.b32.xlu0 %v25, 116
  %v1049 = vpop.permute.xlu0 %1048
  %1050 = vrot.lane.b32.xlu0 %v26, 116
  %v1051 = vpop.permute.xlu0 %1050
  %1052 = vrot.lane.b32.xlu0 %v27, 116
  %v1053 = vpop.permute.xlu0 %1052
  %1054 = vrot.lane.b32.xlu0 %v28, 116
  %v1055 = vpop.permute.xlu0 %1054
  %1056 = vrot.lane.b32.xlu0 %v29, 116
  %v1057 = vpop.permute.xlu0 %1056
  %1058 = vrot.lane.b32.xlu0 %v30, 116
  %v1059 = vpop.permute.xlu0 %1058
  %1060 = vrot.lane.b32.xlu0 %v31, 116
  %v1061 = vpop.permute.xlu0 %1060
  %1062 = vrot.lane.b32.xlu0 %v32, 116
  %v1063 = vpop.permute.xlu0 %1062
  %vm1064 = vcmask 949248
  %v1065 = vsel %vm1064, %v1033, %v1035
  %v1066 = vsel %vm1064, %v1037, %v1039
  %v1067 = vsel %vm1064, %v1041, %v1043
  %v1068 = vsel %vm1064, %v1045, %v1047
  %v1069 = vsel %vm1064, %v1049, %v1051
  %v1070 = vsel %vm1064, %v1053, %v1055
  %v1071 = vsel %vm1064, %v1057, %v1059
  %v1072 = vsel %vm1064, %v1061, %v1063
  %v1081 = vsel %vm41, %v1031, 0
  %v1083 = vsel %vm45, %v1072, 0
  %1085 = vmatprep.subr.mxu0 0.0
  %1086 = vmatpush1.msra.mxu0 %v1065
  %1087 = vmatprep.subr.mxu0 0.0
  %1088 = vmatpush1.msra.mxu0 %v1066
  %1089 = vmatprep.subr.mxu0 0.0
  %1090 = vmatpush1.msra.mxu0 %v1067
  %1091 = vmatprep.subr.mxu0 0.0
  %1092 = vmatpush1.msra.mxu0 %v1068
  %1093 = vmatprep.subr.mxu0 0.0
  %1094 = vmatpush1.msra.mxu0 %v1069
  %1095 = vmatprep.subr.mxu0 0.0
  %1096 = vmatpush1.msra.mxu0 %v1070
  %1097 = vmatprep.subr.mxu0 0.0
  %1098 = vmatpush1.msra.mxu0 %v1071
  %1099 = vmatprep.subr.mxu0 0.0
  %1100 = vmatpush1.msra.mxu0 %v1083
  %1101 = vmatprep.subr.mxu0 0.0
  %1102 = vmatpush1.msra.mxu0 0.0
  %1103 = vmatprep.subr.mxu0 0.0
  %1104 = vmatpush1.msra.mxu0 0.0
  %1105 = vmatprep.subr.mxu0 0.0
  %1106 = vmatpush1.msra.mxu0 0.0
  %1107 = vmatprep.subr.mxu0 0.0
  %1108 = vmatpush1.msra.mxu0 0.0
  %1109 = vmatprep.subr.mxu0 0.0
  %1110 = vmatpush1.msra.mxu0 0.0
  %1111 = vmatprep.subr.mxu0 0.0
  %1112 = vmatpush1.msra.mxu0 0.0
  %1113 = vmatprep.subr.mxu0 0.0
  %1114 = vmatpush1.msra.mxu0 0.0
  %1115 = vmatprep.subr.mxu0 0.0
  %1116 = vmatpush1.msra.mxu0 0.0
  %1117 = vmatprep.subr.mxu0 0.0
  %1118 = vmatpush1.msra.mxu0 0.0
  %1119 = vmatprep.subr.mxu0 0.0
  %1120 = vmatpush1.msra.mxu0 0.0
  %1121 = vmatprep.subr.mxu0 0.0
  %1122 = vmatpush1.msra.mxu0 0.0
  %1123 = vmatprep.subr.mxu0 0.0
  %1124 = vmatpush1.msra.mxu0 0.0
  %1125 = vmatprep.subr.mxu0 0.0
  %1126 = vmatpush1.msra.mxu0 0.0
  %1127 = vmatprep.subr.mxu0 0.0
  %1128 = vmatpush1.msra.mxu0 0.0
  %1129 = vmatprep.subr.mxu0 0.0
  %1130 = vmatpush1.msra.mxu0 0.0
  %1131 = vmatprep.subr.mxu0 0.0
  %1132 = vmatpush1.msra.mxu0 0.0
  %1133 = vmatprep.subr.mxu0 0.0
  %1134 = vmatpush1.msra.mxu0 0.0
  %1135 = vmatprep.subr.mxu0 0.0
  %1136 = vmatpush1.msra.mxu0 0.0
  %1137 = vmatprep.subr.mxu0 0.0
  %1138 = vmatpush1.msra.mxu0 0.0
  %1139 = vmatprep.subr.mxu0 0.0
  %1140 = vmatpush1.msra.mxu0 0.0
  %1141 = vmatprep.subr.mxu0 0.0
  %1142 = vmatpush1.msra.mxu0 0.0
  %1143 = vmatprep.subr.mxu0 0.0
  %1144 = vmatpush1.msra.mxu0 0.0
  %1145 = vmatprep.subr.mxu0 0.0
  %1146 = vmatpush1.msra.mxu0 0.0
  %1147 = vmatprep.subr.mxu0 0.0
  %1148 = vmatpush1.msra.mxu0 0.0
  %1149 = vmatprep.mubr.f32.mxu0 0.0
  %1150 = vmatmul.mubr.f32.gmra.mrb[0].mxu0 %v1081
  %v1151 = vpop.f32.mrb[0].mxu0
  %v1152 = vadd.f32 0.0, %v1151
  %v1153 = vpop.f32.mrb[0].mxu0
  %1154 = vdwg.mxu0
  %v1155 = vmul.f32 %v1152, %v394
  %v1156 = vadd.f32 %v1029, %v1155
  %v1157 = vxor.u32 %v1156, 2147483648
  %v1158 = vmul.f32 %v1157, 1.442695
  %v1159 = vpow.pop %v1158
  %v1160 = vadd.f32 %v1159, 1.0
  %v1161 = vrcp.pop %v1160
  %v1162 = vmul.f32 1.0, %v1161
  %v1163 = vmul.f32 %v1156, %v1162
  %1164 = vst [vmem:[%s4] sm:$0xff] %v1163
  // Predicated region
  $region18: #{conv_transpose_silu.1} parent=0 // pred_check
    _
  $region19: #{conv_transpose_silu.1} parent=0 // pred_check_branch
    %1166 = sbr.rel (0) target = $region21
  $region20: #{conv_transpose_silu.1} parent=0 // pred_region
    _
  $region21: #{conv_transpose_silu.1} parent=0 // pred_fallthru
    _
  // Predicated region
  $region22: #{conv_transpose_silu.1} parent=0 // pred_check
    _
  $region23: #{conv_transpose_silu.1} parent=0 // pred_check_branch
    %1168 = sbr.rel (0) target = $region25
  $region24: #{conv_transpose_silu.1} parent=0 // pred_region
    _
  $region25: #{conv_transpose_silu.1} parent=0 // pred_fallthru
    _

</llo_original>
